<compile_context>
chip_gen: v5e
topology: v5e:2x2
jax: 0.10.0
libtpu: 0.0.40
codegen_flags: <defaults>
</compile_context>

<pallas_src>
import math

import jax
import jax.numpy as jnp
from jax.experimental import pallas as pl
from jax.experimental.pallas import tpu as pltpu


def _multiply_kernel(*refs):
    """refs = (in_ref_0, ..., in_ref_{k-1}, out_ref).

    Elementwise product of all input tiles.  Inputs arrive in their native
    dtype and are cast to float32 in-register (matches torch.ones() f32
    accumulator semantics)."""
    in_refs = refs[:-1]
    out_ref = refs[-1]
    acc = in_refs[0][...].astype(jnp.float32)
    for r in in_refs[1:]:
        acc = acc * r[...].astype(jnp.float32)
    out_ref[...] = acc


def _sublane_multiple(dtype):
    """Required sublane multiple for a packed dtype: 8 f32 / 16 bf16 / 32 int8."""
    itemsize = jnp.dtype(dtype).itemsize
    return 8 * max(1, 4 // itemsize)


def multiply(inp_list, *, vmem_budget_bytes=24 * 1024 * 1024, max_tile_rows=8192):
    """Pallas equivalent of Multiply.forward(inp_list). Returns float32."""
    assert len(inp_list) >= 1
    k = len(inp_list)
    orig_shape = inp_list[0].shape
    n_elems = int(math.prod(orig_shape)) if orig_shape else 1

    if n_elems == 0:
        return jnp.zeros(orig_shape, dtype=jnp.float32)

    # Keep inputs in their native dtype for DMA; only unsupported widths
    # (e.g. 64-bit) get a wrapper-side cast to float32.
    flat = []
    for x in inp_list:
        x = jnp.ravel(x)
        if jnp.dtype(x.dtype).itemsize not in (1, 2, 4):
            x = x.astype(jnp.float32)
        flat.append(x)

    n_main = (n_elems // 128) * 128      # 128-aligned prefix handled by the kernel
    rows = n_main // 128

    out_parts = []

    if rows > 0:
        # Sublane multiple required by all inputs + the f32 output.
        sub_mult = 8
        for x in flat:
            sub_mult = max(sub_mult, _sublane_multiple(x.dtype))

        # Per grid step: double-buffered input blocks (native dtype) + f32 output.
        bytes_per_row_all_buffers = 2 * 128 * 4  # f32 output
        for x in flat:
            bytes_per_row_all_buffers += 2 * 128 * jnp.dtype(x.dtype).itemsize

        tile_rows = vmem_budget_bytes // bytes_per_row_all_buffers
        tile_rows = max(sub_mult, min(max_tile_rows, tile_rows))
        tile_rows = (tile_rows // sub_mult) * sub_mult
        if rows <= tile_rows:
            # Small tensor: single (possibly ragged) block, no grid overhead.
            tile_rows = ((rows + sub_mult - 1) // sub_mult) * sub_mult

        grid_len = pl.cdiv(rows, tile_rows)

        mains = [x[:n_main].reshape(rows, 128) for x in flat]

        block = (tile_rows, 128)
        index_map = lambda i: (i, 0)

        bytes_accessed = rows * 128 * 4  # output writes
        for x in flat:
            bytes_accessed += rows * 128 * jnp.dtype(x.dtype).itemsize
        cost = pl.CostEstimate(
            flops=max(k - 1, 0) * rows * 128,
            transcendentals=0,
            bytes_accessed=bytes_accessed,
        )

        out_main = pl.pallas_call(
            _multiply_kernel,
            out_shape=jax.ShapeDtypeStruct((rows, 128), jnp.float32),
            grid=(grid_len,),
            in_specs=[pl.BlockSpec(block, index_map) for _ in mains],
            out_specs=pl.BlockSpec(block, index_map),
            compiler_params=pltpu.CompilerParams(
                dimension_semantics=("parallel",),
                vmem_limit_bytes=32 * 1024 * 1024,
            ),
            cost_estimate=cost,
        )(*mains)
        out_parts.append(out_main.reshape(-1))

    # Ragged tail (< 128 elements): plain jnp, avoids copying all k inputs
    # just to pad a handful of elements.
    if n_main < n_elems:
        tail = flat[0][n_main:].astype(jnp.float32)
        for x in flat[1:]:
            tail = tail * x[n_main:].astype(jnp.float32)
        out_parts.append(tail)

    out_flat = out_parts[0] if len(out_parts) == 1 else jnp.concatenate(out_parts)
    return out_flat.reshape(orig_shape)


if __name__ == "__main__":
    key = jax.random.PRNGKey(0)
    k0, k1, k2, k3, k4, k5 = jax.random.split(key, 6)

    def reference(xs, shape):
        ref = jnp.ones(shape, dtype=jnp.float32)
        for x in xs:
            ref = ref * x.astype(jnp.float32)
        return ref

    # Case 1: NCHW, 128-aligned element count, 3 f32 inputs.
    shape = (2, 4, 16, 16)
    x0 = jax.random.normal(k0, shape, dtype=jnp.float32)
    x1 = jax.random.normal(k1, shape, dtype=jnp.float32)
    x2 = jax.random.normal(k2, shape, dtype=jnp.float32)
    out = jax.block_until_ready(multiply([x0, x1, x2]))
    ref = reference([x0, x1, x2], shape)
    assert out.shape == shape and out.dtype == jnp.float32
    assert jnp.allclose(out, ref, atol=1e-6, rtol=1e-6)

    # Case 2: odd element count (exercises the aligned-prefix + jnp-tail path).
    shape2 = (3, 5, 7, 11)
    y0 = jax.random.normal(k3, shape2, dtype=jnp.float32)
    y1 = jax.random.normal(k4, shape2, dtype=jnp.float32)
    out2 = jax.block_until_ready(multiply([y0, y1]))
    ref2 = reference([y0, y1], shape2)
    assert out2.shape == shape2 and out2.dtype == jnp.float32
    assert jnp.allclose(out2, ref2, atol=1e-6, rtol=1e-6)

    # Case 3: mixed dtypes (bf16 input DMA'd natively, cast inside the kernel).
    z0 = jax.random.normal(k5, shape, dtype=jnp.float32)
    z1 = jax.random.normal(k0, shape, dtype=jnp.bfloat16)
    out3 = jax.block_until_ready(multiply([z0, z1]))
    ref3 = reference([z0, z1], shape)
    assert out3.shape == shape and out3.dtype == jnp.float32
    assert jnp.allclose(out3, ref3, atol=1e-6, rtol=1e-6)

    print("KERNEL_OK")
</pallas_src>

<mosaic_0001>
module attributes {stable_mosaic.version = 11 : i64} {
  func.func @_multiply_kernel(%arg0: i32, %arg1: memref<16x128xf32, #tpu.memory_space<vmem>>, %arg2: memref<16x128xf32, #tpu.memory_space<vmem>>, %arg3: memref<16x128xf32, #tpu.memory_space<vmem>>, %arg4: memref<16x128xf32, #tpu.memory_space<vmem>>) attributes {dimension_semantics = [#tpu.dimension_semantics<parallel>], iteration_bounds = array<i64: 1>, scalar_prefetch = 0 : i64, scratch_operands = 0 : i64, tpu.core_type = #tpu.core_type<tc>, window_params = [{transform_indices = @transform_0, window_bounds = array<i64: 16, 128>}, {transform_indices = @transform_1, window_bounds = array<i64: 16, 128>}, {transform_indices = @transform_2, window_bounds = array<i64: 16, 128>}, {transform_indices = @transform_3, window_bounds = array<i64: 16, 128>}]} {
    %c0 = arith.constant 0 : index
    %c0_0 = arith.constant 0 : index
    %0 = vector.load %arg1[%c0, %c0_0] : memref<16x128xf32, #tpu.memory_space<vmem>>, vector<16x128xf32>
    %c0_1 = arith.constant 0 : index
    %c0_2 = arith.constant 0 : index
    %1 = vector.load %arg2[%c0_1, %c0_2] : memref<16x128xf32, #tpu.memory_space<vmem>>, vector<16x128xf32>
    %2 = arith.mulf %0, %1 : vector<16x128xf32>
    %c0_3 = arith.constant 0 : index
    %c0_4 = arith.constant 0 : index
    %3 = vector.load %arg3[%c0_3, %c0_4] : memref<16x128xf32, #tpu.memory_space<vmem>>, vector<16x128xf32>
    %4 = arith.mulf %2, %3 : vector<16x128xf32>
    %c0_5 = arith.constant 0 : index
    %c0_6 = arith.constant 0 : index
    %5 = vector.load %arg4[%c0_5, %c0_6] : memref<16x128xf32, #tpu.memory_space<vmem>>, vector<16x128xf32>
    tpu.vector_store %arg4[%c0_5, %c0_6], %4 {strides = array<i32>} : memref<16x128xf32, #tpu.memory_space<vmem>>, vector<16x128xf32>,
    return
  }
  func.func @transform_0(%arg0: i32) -> (i32, i32) {
    %c0_i32 = arith.constant 0 : i32
    %c0_i32_0 = arith.constant 0 : i32
    return %arg0, %c0_i32 : i32, i32
  }
  func.func @transform_1(%arg0: i32) -> (i32, i32) {
    %c0_i32 = arith.constant 0 : i32
    %c0_i32_0 = arith.constant 0 : i32
    return %arg0, %c0_i32 : i32, i32
  }
  func.func @transform_2(%arg0: i32) -> (i32, i32) {
    %c0_i32 = arith.constant 0 : i32
    %c0_i32_0 = arith.constant 0 : i32
    return %arg0, %c0_i32 : i32, i32
  }
  func.func @transform_3(%arg0: i32) -> (i32, i32) {
    %c0_i32 = arith.constant 0 : i32
    %c0_i32_0 = arith.constant 0 : i32
    return %arg0, %c0_i32 : i32, i32
  }
}

</mosaic_0001>

<llo_original>
// kernel: tpu_custom_call.1
$region0: #{tpu_custom_call.1}
  #allocation0 [shape = 'u32[]', space=smem, size = 0x4, offset = 0x4, fixed_abs, tag = 'smem constant byte address 0x4 - core index']
  #allocation1 [shape = 'u32[72,128]{1,0:T(1,128)}', space=vmem, size = 0x9000, scoped, tag = 'internal scratch']
  %s0 = inlined_call_operand.hbm [shape: f32[16,128], index: 0, kind: input, shape index: {}]
  %s1 = inlined_call_operand.hbm [shape: f32[16,128], index: 1, kind: input, shape index: {}]
  %s2 = inlined_call_operand.hbm [shape: f32[16,128], index: 2, kind: input, shape index: {}]
  %s3 = inlined_call_operand.hbm [shape: f32[16,128], index: 3, kind: output, shape index: {}]
  %s4 = sld [smem:[#allocation0]]
  $region34: #{tpu_custom_call.1} parent=0
    _
  %s6 = ssub.s32 1, %s4
  %s7 = scalar_select 0, %s6, %s4
  $region1: #{tpu_custom_call.1} parent=0
    #allocation2 [shape = 'u8[8192]{0}', space=vmem, size = 0x2000, scoped, tag = 'input window, operand 0, single buffered']
    #allocation3 [shape = 's32[1]{0}', space=sflag, size = 0x4, scoped, tag = 'scoped memory for tpu_custom_call.1']
    #allocation4 [shape = 's32[1]{0}', space=sflag, size = 0x4, scoped, tag = 'scoped memory for tpu_custom_call.1']
    #allocation5 [shape = 'u8[8192]{0}', space=vmem, size = 0x2000, scoped, tag = 'input window, operand 1, single buffered']
    #allocation6 [shape = 's32[1]{0}', space=sflag, size = 0x4, scoped, tag = 'scoped memory for tpu_custom_call.1']
    #allocation7 [shape = 'u8[8192]{0}', space=vmem, size = 0x2000, scoped, tag = 'input window, operand 2, single buffered']
    #allocation8 [shape = 'u8[8192]{0}', space=vmem, size = 0x2000, scoped, tag = 'output window, operand 0, single buffered']
    %8 = vsyncpa [#allocation3], 0
    %9 = vsyncpa [#allocation6], 0
    %10 = vsyncpa [#allocation4], 0
    // Predicated region
    $region2: #{tpu_custom_call.1} parent=1 // pred_check
      _
    $region3: #{tpu_custom_call.1} parent=1 // pred_check_branch
      %12 = sbr.rel (0) target = $region5
    $region4: #{tpu_custom_call.1} parent=1 // pred_region
      %14 = vsyncadd [#allocation3], 0
      %s15 = sshll.u32 %s0, 4
      %s16 = int_to_ptr.hbm [resolvable:$true] %s15
      %s17 = sshll.u32 [#allocation2], 4
      %s18 = int_to_ptr.vmem [resolvable:$true] %s17
      %23 = dma.hbm_to_vmem [thread:$0]  %s16, 256, %s18, [#allocation3], 128, 128, 8
    $region5: #{tpu_custom_call.1} parent=1 // pred_fallthru
      _
    // Predicated region
    $region6: #{tpu_custom_call.1} parent=1 // pred_check
      _
    $region7: #{tpu_custom_call.1} parent=1 // pred_check_branch
      %25 = sbr.rel (0) target = $region9
    $region8: #{tpu_custom_call.1} parent=1 // pred_region
      %27 = vsyncadd [#allocation6], 0
      %s28 = sshll.u32 %s1, 4
      %s29 = int_to_ptr.hbm [resolvable:$true] %s28
      %s30 = sshll.u32 [#allocation5], 4
      %s31 = int_to_ptr.vmem [resolvable:$true] %s30
      %36 = dma.hbm_to_vmem [thread:$0]  %s29, 256, %s31, [#allocation6], 128, 128, 8
    $region9: #{tpu_custom_call.1} parent=1 // pred_fallthru
      _
    // Predicated region
    $region10: #{tpu_custom_call.1} parent=1 // pred_check
      _
    $region11: #{tpu_custom_call.1} parent=1 // pred_check_branch
      %38 = sbr.rel (0) target = $region13
    $region12: #{tpu_custom_call.1} parent=1 // pred_region
      %40 = vsyncadd [#allocation6], 0
      %s41 = sshll.u32 %s2, 4
      %s42 = int_to_ptr.hbm [resolvable:$true] %s41
      %s43 = sshll.u32 [#allocation7], 4
      %s44 = int_to_ptr.vmem [resolvable:$true] %s43
      %49 = dma.hbm_to_vmem [thread:$0]  %s42, 256, %s44, [#allocation6], 128, 128, 8
    $region13: #{tpu_custom_call.1} parent=1 // pred_fallthru
      _
    // Predicated region
    $region14: #{tpu_custom_call.1} parent=1 // pred_check
      _
    $region15: #{tpu_custom_call.1} parent=1 // pred_check_branch
      %51 = sbr.rel (0) target = $region17
    $region16: #{tpu_custom_call.1} parent=1 // pred_region
      %53 = dma.done [#allocation3], 256
    $region17: #{tpu_custom_call.1} parent=1 // pred_fallthru
      _
    // Predicated region
    $region18: #{tpu_custom_call.1} parent=1 // pred_check
      _
    $region19: #{tpu_custom_call.1} parent=1 // pred_check_branch
      %55 = sbr.rel (0) target = $region21
    $region20: #{tpu_custom_call.1} parent=1 // pred_region
      %57 = dma.done [#allocation6], 256
    $region21: #{tpu_custom_call.1} parent=1 // pred_fallthru
      _
    // Predicated region
    $region22: #{tpu_custom_call.1} parent=1 // pred_check
      _
    $region23: #{tpu_custom_call.1} parent=1 // pred_check_branch
      %59 = sbr.rel (0) target = $region25
    $region24: #{tpu_custom_call.1} parent=1 // pred_region
      %61 = dma.done [#allocation6], 256
    $region25: #{tpu_custom_call.1} parent=1 // pred_fallthru
      _
    %v62 = vld [vmem:[#allocation2] sm:$0xff]
    %v63 = vld [vmem:[#allocation2 + $0x8] sm:$0xff]
    %v64 = vld [vmem:[#allocation5] sm:$0xff]
    %v65 = vld [vmem:[#allocation5 + $0x8] sm:$0xff]
    %v66 = vmul.f32 %v62, %v64
    %v67 = vmul.f32 %v63, %v65
    %v68 = vld [vmem:[#allocation7] sm:$0xff]
    %v69 = vld [vmem:[#allocation7 + $0x8] sm:$0xff]
    %v70 = vmul.f32 %v66, %v68
    %v71 = vmul.f32 %v67, %v69
    %72 = vst [vmem:[#allocation8] sm:$0xff] %v70
    %73 = vst [vmem:[#allocation8 + $0x8] sm:$0xff] %v71
    // Predicated region
    $region26: #{tpu_custom_call.1} parent=1 // pred_check
      _
    $region27: #{tpu_custom_call.1} parent=1 // pred_check_branch
      %75 = sbr.rel (0) target = $region29
    $region28: #{tpu_custom_call.1} parent=1 // pred_region
      %77 = vsyncadd [#allocation4], 0
      %s78 = sshll.u32 [#allocation8], 4
      %s79 = int_to_ptr.vmem [resolvable:$true] %s78
      %s80 = sshll.u32 %s3, 4
      %s81 = int_to_ptr.hbm [resolvable:$true] %s80
      %86 = dma.vmem_to_hbm [thread:$0]  %s79, 256, %s81, [#allocation4], 128, 128, 8
    $region29: #{tpu_custom_call.1} parent=1 // pred_fallthru
      _
    // Predicated region
    $region30: #{tpu_custom_call.1} parent=1 // pred_check
      _
    $region31: #{tpu_custom_call.1} parent=1 // pred_check_branch
      %88 = sbr.rel (0) target = $region33
    $region32: #{tpu_custom_call.1} parent=1 // pred_region
      %90 = dma.done [#allocation4], 256
    $region33: #{tpu_custom_call.1} parent=1 // pred_fallthru
      _
    %91 = vsyncpa [#allocation3], 1
    %92 = vsyncpa [#allocation6], 1
    %93 = vsyncpa [#allocation4], 1

</llo_original>
